<compile_context>
chip_gen: v5e
topology: v5e:2x2
jax: 0.10.0
libtpu: 0.0.40
codegen_flags: <defaults>
</compile_context>

<pallas_src>
import functools

import jax
import jax.numpy as jnp
from jax.experimental import pallas as pl
from jax.experimental.pallas import tpu as pltpu


def _expanded_shape(shape, T, dim):
    assert shape[dim] % T == 0, "dim size must be divisible by T"
    return tuple(shape[:dim]) + (T, shape[dim] // T) + tuple(shape[dim + 1:])


def expand_temporal_dim(x, T, dim=0):
    """ExpandTemporalDim(T, dim).forward(x): pure metadata dim-split.

    A reshape of a contiguous array moves zero bytes; this is the default
    (and fastest possible) path — no Pallas kernel, no HBM traffic."""
    return x.reshape(_expanded_shape(x.shape, T, dim))


# ---------------------------------------------------------------------------
# Materialized (fresh-buffer) path: chunked HBM->HBM DMA copy.
# ---------------------------------------------------------------------------

def _dma_copy_kernel(rows, rows_per_chunk, chunks_per_step, x_hbm, o_hbm, sems):
    """One grid step copies `chunks_per_step` contiguous row-ranges.

    All DMAs of the step are .start()-ed before any .wait() (pipelined issue,
    semaphore array), so the DMA engine never idles between chunks.  The
    globally-last chunk's start is clamped to rows - rows_per_chunk, so every
    chunk has the same static size and non-divisible row counts are handled by
    an overlapped rewrite of identical data (harmless)."""
    step = pl.program_id(0)
    last_start = rows - rows_per_chunk  # >= 0 since rows_per_chunk = cdiv(rows, n)

    copies = []
    for j in range(chunks_per_step):  # static, unrolled
        chunk = step * chunks_per_step + j
        start = jnp.minimum(chunk * rows_per_chunk, last_start)
        sl = pl.ds(start, rows_per_chunk)
        cp = pltpu.make_async_copy(x_hbm.at[sl], o_hbm.at[sl], sems.at[j])
        cp.start()
        copies.append(cp)
    for cp in copies:
        cp.wait()


def _num_tensorcores():
    """TensorCores per device: v7x exposes 2, v5e/v6e expose 1."""
    try:
        kind = jax.devices()[0].device_kind.lower()
    except Exception:
        return 1
    return 2 if ("v7" in kind or "7x" in kind) else 1


def _plan_chunks(rows, row_bytes, force_plan=None):
    """Pick (num_steps, chunks_per_step, rows_per_chunk).

    Single-TC parts: 1 step / 1 DMA — a single large contiguous HBM->HBM DMA
    already saturates copy bandwidth; more steps only add fixed overhead.
    v7x: 2 even steps (one big DMA per TensorCore) when the copy is large
    enough (>= 8 MiB per DMA) to stay bandwidth-bound at ~3.2 TB/s."""
    if force_plan is not None:
        num_steps, chunks_per_step = force_plan
    else:
        min_chunk_bytes = 8 << 20  # per-DMA floor so issue latency stays hidden
        total_bytes = rows * row_bytes
        n_tc = _num_tensorcores()
        if n_tc >= 2 and total_bytes >= 2 * min_chunk_bytes and rows >= 2:
            num_steps = 2          # even split across the 2 TensorCores
        else:
            num_steps = 1          # one line-rate DMA
        chunks_per_step = 1        # >1 would still be pipelined by the kernel
    total_chunks = num_steps * chunks_per_step
    rows_per_chunk = pl.cdiv(rows, total_chunks)
    return num_steps, chunks_per_step, rows_per_chunk


def expand_temporal_dim_materialized(x, T, dim=0, *, use_pallas=None,
                                     _force_plan=None):
    """Same semantics as expand_temporal_dim, but forces a fresh output buffer.

    use_pallas: None (auto: Pallas only for large tensors), True, or False.
    """
    out_shape = _expanded_shape(x.shape, T, dim)

    # Empty-input guard: nothing to copy.
    if x.size == 0:
        return x.reshape(out_shape)

    nbytes = x.size * x.dtype.itemsize
    if use_pallas is None:
        # Below a few MiB an XLA-level copy reaches the same HBM line rate
        # without custom-call / Mosaic / grid overhead.
        use_pallas = nbytes >= (4 << 20)
    if not use_pallas:
        return jnp.copy(x).reshape(out_shape)

    # Flatten to 2-D (metadata only).  Chunks of full rows of a row-major
    # array are single contiguous HBM ranges, so each DMA is a linear copy.
    cols = int(x.shape[-1])
    rows = x.size // cols
    x2 = x.reshape(rows, cols)

    row_bytes = cols * x.dtype.itemsize
    num_steps, chunks_per_step, rows_per_chunk = _plan_chunks(
        rows, row_bytes, _force_plan)

    y2 = pl.pallas_call(
        functools.partial(_dma_copy_kernel, rows, rows_per_chunk,
                          chunks_per_step),
        out_shape=jax.ShapeDtypeStruct((rows, cols), x.dtype),
        grid=(num_steps,),
        # Keep both operands in HBM; the DMA engine does the copy at line rate.
        in_specs=[pl.BlockSpec(memory_space=pl.ANY)],
        out_specs=pl.BlockSpec(memory_space=pl.ANY),
        scratch_shapes=[pltpu.SemaphoreType.DMA((chunks_per_step,))],
        compiler_params=pltpu.CompilerParams(
            dimension_semantics=("parallel",)),
    )(x2)

    # Metadata-only dim split (equivalent of torch .view()).
    return y2.reshape(out_shape)


if __name__ == "__main__":
    # T=4 timesteps folded into the batch dim, batch=2, channels=4, spatial=16.
    T, B, C, H, W = 4, 2, 4, 16, 16
    key = jax.random.PRNGKey(0)
    x_seq = jax.random.normal(key, (T * B, C, H, W), dtype=jnp.float32)
    y_ref = x_seq.reshape((T, B, C, H, W))

    # Production path: metadata-only reshape (zero data movement).
    y_view = expand_temporal_dim(x_seq, T, dim=0)

    # Pallas path (forced): single-step HBM->HBM DMA copy.
    y_pallas = jax.block_until_ready(
        expand_temporal_dim_materialized(x_seq, T, dim=0, use_pallas=True))

    # Pallas path, forced multi-step / multi-DMA plan: exercises the parallel
    # grid, the pipelined start-all-then-wait-all issue, the semaphore array,
    # and the clamped (overlapped) tail chunk (512 rows / 6 chunks).
    y_multi = jax.block_until_ready(
        expand_temporal_dim_materialized(x_seq, T, dim=0, use_pallas=True,
                                         _force_plan=(2, 3)))

    # Auto path on a small tensor: XLA copy (no Pallas) — still fresh buffer.
    y_auto = jax.block_until_ready(
        expand_temporal_dim_materialized(x_seq, T, dim=0))

    for y in (y_view, y_pallas, y_multi, y_auto):
        assert y.shape == (T, B, C, H, W), y.shape
        assert y.dtype == x_seq.dtype
        assert bool(jnp.array_equal(y, y_ref))

    print("KERNEL_OK")
</pallas_src>

<mosaic_0001>
module attributes {stable_mosaic.version = 11 : i64} {
  func.func @_dma_copy_kernel(%arg0: i32, %arg1: memref<512x16xf32, #tpu.memory_space<any>>, %arg2: memref<512x16xf32, #tpu.memory_space<any>>, %arg3: memref<1x!tpu.dma_semaphore, #tpu.memory_space<semaphore_mem>>) attributes {dimension_semantics = [#tpu.dimension_semantics<parallel>], iteration_bounds = array<i64: 1>, scalar_prefetch = 0 : i64, scratch_operands = 1 : i64, tpu.core_type = #tpu.core_type<tc>, window_params = [{}, {}]} {
    %c1_i32 = arith.constant 1 : i32
    %0 = arith.muli %arg0, %c1_i32 : i32
    %c0_i32 = arith.constant 0 : i32
    %1 = arith.addi %0, %c0_i32 : i32
    %c512_i32 = arith.constant 512 : i32
    %2 = arith.muli %1, %c512_i32 : i32
    %c0_i32_0 = arith.constant 0 : i32
    %3 = arith.minsi %2, %c0_i32_0 : i32
    %c0_i32_1 = arith.constant 0 : i32
    %c0_i32_2 = arith.constant 0 : i32
    %4 = tpu.memref_slice %arg1[%3, %c0_i32_2] : memref<512x16xf32, #tpu.memory_space<any>> -> memref<512x16xf32, #tpu.memory_space<any>>
    %c0_i32_3 = arith.constant 0 : i32
    %5 = tpu.memref_slice %arg2[%3, %c0_i32_3] : memref<512x16xf32, #tpu.memory_space<any>> -> memref<512x16xf32, #tpu.memory_space<any>>
    %6 = tpu.memref_slice %arg3[%c0_i32_1] : memref<1x!tpu.dma_semaphore, #tpu.memory_space<semaphore_mem>> -> memref<1x!tpu.dma_semaphore, #tpu.memory_space<semaphore_mem>>
    %7 = tpu.memref_squeeze %6 : memref<1x!tpu.dma_semaphore, #tpu.memory_space<semaphore_mem>> -> memref<!tpu.dma_semaphore, #tpu.memory_space<semaphore_mem>>
    tpu.enqueue_dma source(%4 : memref<512x16xf32, #tpu.memory_space<any>>) target(%5 : memref<512x16xf32, #tpu.memory_space<any>>) target_semaphore(%7 : memref<!tpu.dma_semaphore, #tpu.memory_space<semaphore_mem>>)
    %c0_i32_4 = arith.constant 0 : i32
    %c0_i32_5 = arith.constant 0 : i32
    %8 = tpu.memref_slice %arg1[%3, %c0_i32_5] : memref<512x16xf32, #tpu.memory_space<any>> -> memref<512x16xf32, #tpu.memory_space<any>>
    %c0_i32_6 = arith.constant 0 : i32
    %9 = tpu.memref_slice %arg2[%3, %c0_i32_6] : memref<512x16xf32, #tpu.memory_space<any>> -> memref<512x16xf32, #tpu.memory_space<any>>
    %10 = tpu.memref_slice %arg3[%c0_i32_4] : memref<1x!tpu.dma_semaphore, #tpu.memory_space<semaphore_mem>> -> memref<1x!tpu.dma_semaphore, #tpu.memory_space<semaphore_mem>>
    %11 = tpu.memref_squeeze %10 : memref<1x!tpu.dma_semaphore, #tpu.memory_space<semaphore_mem>> -> memref<!tpu.dma_semaphore, #tpu.memory_space<semaphore_mem>>
    tpu.wait_dma2 semaphore(%11 : memref<!tpu.dma_semaphore, #tpu.memory_space<semaphore_mem>>) src(%8 : memref<512x16xf32, #tpu.memory_space<any>>) dst(%9 : memref<512x16xf32, #tpu.memory_space<any>>)
    return
  }
}

</mosaic_0001>

<llo_original>
// kernel: tpu_custom_call.1
$region0: #{tpu_custom_call.1}
  #allocation0 [shape = 'u32[]', space=smem, size = 0x4, offset = 0x4, fixed_abs, tag = 'smem constant byte address 0x4 - core index']
  #allocation1 [shape = 'u32[72,128]{1,0:T(1,128)}', space=vmem, size = 0x9000, scoped, tag = 'internal scratch']
  #allocation2 [shape = 's32[1]{0}', space=sflag, size = 0x4, scoped, tag = 'scratch operand']
  #allocation3 [shape = 's32[]', space=sflag, size = 0x4, offset = 0, fixed_abs, tag = 'sflag constant byte address 0x0 - dummy sync flag']
  %s0 = inlined_call_operand.vmem [shape: f32[512,16], index: 0, kind: input, shape index: {}]
  %s1 = inlined_call_operand.vmem [shape: f32[512,16], index: 1, kind: output, shape index: {}]
  %s2 = sld [smem:[#allocation0]]
  $region21: #{tpu_custom_call.1} parent=0
    _
  %s4 = ssub.s32 1, %s2
  %s5 = scalar_select 0, %s4, %s2
  %s6 = smul.u32 0, 512
  %p7 = scmp.lt.s32.totalorder %s6, 0
  %s8 = scalar_select %p7, %s6, 0
  %s9 = scalar_lea.vmem %s0, %s8
  %s10 = scalar_lea.vmem %s1, %s8
  // Predicated region
  $region2: #{tpu_custom_call.1} parent=0 // pred_check
    _
  $region3: #{tpu_custom_call.1} parent=0 // pred_check_branch
    %12 = sbr.rel (0) target = $region5
  $region4: #{tpu_custom_call.1} parent=0 // pred_region
    loop: start=0, step=1, limit=1
    $region6: #{tpu_custom_call.1} parent=4 // loop_pre_header
      _
    $region7: #{tpu_custom_call.1} parent=4 // loop_header
      %s14 = sphi 0, %s18
      %p15 = scmp.ge.s32.totalorder %s14, 1
      %s19 = sphi %s9, %s9
      %s20 = sphi %s10, %s10
    $region8: #{tpu_custom_call.1} parent=4 // loop_header_branch
      %17 = sbr.rel (%p15) target = $region12
    $region9: #{tpu_custom_call.1} parent=4 // loop_body
      %v21 = vld [vmem:[%s19] sm:$0xff]
      %22 = vst [vmem:[%s20] sm:$0xff] %v21
      %v23 = vld [vmem:[%s19 + $0x8] sm:$0xff]
      %24 = vst [vmem:[%s20 + $0x8] sm:$0xff] %v23
      %v25 = vld [vmem:[%s19 + $0x10] sm:$0xff]
      %26 = vst [vmem:[%s20 + $0x10] sm:$0xff] %v25
      %v27 = vld [vmem:[%s19 + $0x18] sm:$0xff]
      %28 = vst [vmem:[%s20 + $0x18] sm:$0xff] %v27
      %v29 = vld [vmem:[%s19 + $0x20] sm:$0xff]
      %30 = vst [vmem:[%s20 + $0x20] sm:$0xff] %v29
      %v31 = vld [vmem:[%s19 + $0x28] sm:$0xff]
      %32 = vst [vmem:[%s20 + $0x28] sm:$0xff] %v31
      %v33 = vld [vmem:[%s19 + $0x30] sm:$0xff]
      %34 = vst [vmem:[%s20 + $0x30] sm:$0xff] %v33
      %v35 = vld [vmem:[%s19 + $0x38] sm:$0xff]
      %36 = vst [vmem:[%s20 + $0x38] sm:$0xff] %v35
      %v37 = vld [vmem:[%s19 + $0x40] sm:$0xff]
      %38 = vst [vmem:[%s20 + $0x40] sm:$0xff] %v37
      %v39 = vld [vmem:[%s19 + $0x48] sm:$0xff]
      %40 = vst [vmem:[%s20 + $0x48] sm:$0xff] %v39
      %v41 = vld [vmem:[%s19 + $0x50] sm:$0xff]
      %42 = vst [vmem:[%s20 + $0x50] sm:$0xff] %v41
      %v43 = vld [vmem:[%s19 + $0x58] sm:$0xff]
      %44 = vst [vmem:[%s20 + $0x58] sm:$0xff] %v43
      %v45 = vld [vmem:[%s19 + $0x60] sm:$0xff]
      %46 = vst [vmem:[%s20 + $0x60] sm:$0xff] %v45
      %v47 = vld [vmem:[%s19 + $0x68] sm:$0xff]
      %48 = vst [vmem:[%s20 + $0x68] sm:$0xff] %v47
      %v49 = vld [vmem:[%s19 + $0x70] sm:$0xff]
      %50 = vst [vmem:[%s20 + $0x70] sm:$0xff] %v49
      %v51 = vld [vmem:[%s19 + $0x78] sm:$0xff]
      %52 = vst [vmem:[%s20 + $0x78] sm:$0xff] %v51
      %v53 = vld [vmem:[%s19 + $0x80] sm:$0xff]
      %54 = vst [vmem:[%s20 + $0x80] sm:$0xff] %v53
      %v55 = vld [vmem:[%s19 + $0x88] sm:$0xff]
      %56 = vst [vmem:[%s20 + $0x88] sm:$0xff] %v55
      %v57 = vld [vmem:[%s19 + $0x90] sm:$0xff]
      %58 = vst [vmem:[%s20 + $0x90] sm:$0xff] %v57
      %v59 = vld [vmem:[%s19 + $0x98] sm:$0xff]
      %60 = vst [vmem:[%s20 + $0x98] sm:$0xff] %v59
      %v61 = vld [vmem:[%s19 + $0xa0] sm:$0xff]
      %62 = vst [vmem:[%s20 + $0xa0] sm:$0xff] %v61
      %v63 = vld [vmem:[%s19 + $0xa8] sm:$0xff]
      %64 = vst [vmem:[%s20 + $0xa8] sm:$0xff] %v63
      %v65 = vld [vmem:[%s19 + $0xb0] sm:$0xff]
      %66 = vst [vmem:[%s20 + $0xb0] sm:$0xff] %v65
      %v67 = vld [vmem:[%s19 + $0xb8] sm:$0xff]
      %68 = vst [vmem:[%s20 + $0xb8] sm:$0xff] %v67
      %v69 = vld [vmem:[%s19 + $0xc0] sm:$0xff]
      %70 = vst [vmem:[%s20 + $0xc0] sm:$0xff] %v69
      %v71 = vld [vmem:[%s19 + $0xc8] sm:$0xff]
      %72 = vst [vmem:[%s20 + $0xc8] sm:$0xff] %v71
      %v73 = vld [vmem:[%s19 + $0xd0] sm:$0xff]
      %74 = vst [vmem:[%s20 + $0xd0] sm:$0xff] %v73
      %v75 = vld [vmem:[%s19 + $0xd8] sm:$0xff]
      %76 = vst [vmem:[%s20 + $0xd8] sm:$0xff] %v75
      %v77 = vld [vmem:[%s19 + $0xe0] sm:$0xff]
      %78 = vst [vmem:[%s20 + $0xe0] sm:$0xff] %v77
      %v79 = vld [vmem:[%s19 + $0xe8] sm:$0xff]
      %80 = vst [vmem:[%s20 + $0xe8] sm:$0xff] %v79
      %v81 = vld [vmem:[%s19 + $0xf0] sm:$0xff]
      %82 = vst [vmem:[%s20 + $0xf0] sm:$0xff] %v81
      %v83 = vld [vmem:[%s19 + $0xf8] sm:$0xff]
      %84 = vst [vmem:[%s20 + $0xf8] sm:$0xff] %v83
      %v85 = vld [vmem:[%s19 + $0x100] sm:$0xff]
      %86 = vst [vmem:[%s20 + $0x100] sm:$0xff] %v85
      %v87 = vld [vmem:[%s19 + $0x108] sm:$0xff]
      %88 = vst [vmem:[%s20 + $0x108] sm:$0xff] %v87
      %v89 = vld [vmem:[%s19 + $0x110] sm:$0xff]
      %90 = vst [vmem:[%s20 + $0x110] sm:$0xff] %v89
      %v91 = vld [vmem:[%s19 + $0x118] sm:$0xff]
      %92 = vst [vmem:[%s20 + $0x118] sm:$0xff] %v91
      %v93 = vld [vmem:[%s19 + $0x120] sm:$0xff]
      %94 = vst [vmem:[%s20 + $0x120] sm:$0xff] %v93
      %v95 = vld [vmem:[%s19 + $0x128] sm:$0xff]
      %96 = vst [vmem:[%s20 + $0x128] sm:$0xff] %v95
      %v97 = vld [vmem:[%s19 + $0x130] sm:$0xff]
      %98 = vst [vmem:[%s20 + $0x130] sm:$0xff] %v97
      %v99 = vld [vmem:[%s19 + $0x138] sm:$0xff]
      %100 = vst [vmem:[%s20 + $0x138] sm:$0xff] %v99
      %v101 = vld [vmem:[%s19 + $0x140] sm:$0xff]
      %102 = vst [vmem:[%s20 + $0x140] sm:$0xff] %v101
      %v103 = vld [vmem:[%s19 + $0x148] sm:$0xff]
      %104 = vst [vmem:[%s20 + $0x148] sm:$0xff] %v103
      %v105 = vld [vmem:[%s19 + $0x150] sm:$0xff]
      %106 = vst [vmem:[%s20 + $0x150] sm:$0xff] %v105
      %v107 = vld [vmem:[%s19 + $0x158] sm:$0xff]
      %108 = vst [vmem:[%s20 + $0x158] sm:$0xff] %v107
      %v109 = vld [vmem:[%s19 + $0x160] sm:$0xff]
      %110 = vst [vmem:[%s20 + $0x160] sm:$0xff] %v109
      %v111 = vld [vmem:[%s19 + $0x168] sm:$0xff]
      %112 = vst [vmem:[%s20 + $0x168] sm:$0xff] %v111
      %v113 = vld [vmem:[%s19 + $0x170] sm:$0xff]
      %114 = vst [vmem:[%s20 + $0x170] sm:$0xff] %v113
      %v115 = vld [vmem:[%s19 + $0x178] sm:$0xff]
      %116 = vst [vmem:[%s20 + $0x178] sm:$0xff] %v115
      %v117 = vld [vmem:[%s19 + $0x180] sm:$0xff]
      %118 = vst [vmem:[%s20 + $0x180] sm:$0xff] %v117
      %v119 = vld [vmem:[%s19 + $0x188] sm:$0xff]
      %120 = vst [vmem:[%s20 + $0x188] sm:$0xff] %v119
      %v121 = vld [vmem:[%s19 + $0x190] sm:$0xff]
      %122 = vst [vmem:[%s20 + $0x190] sm:$0xff] %v121
      %v123 = vld [vmem:[%s19 + $0x198] sm:$0xff]
      %124 = vst [vmem:[%s20 + $0x198] sm:$0xff] %v123
      %v125 = vld [vmem:[%s19 + $0x1a0] sm:$0xff]
      %126 = vst [vmem:[%s20 + $0x1a0] sm:$0xff] %v125
      %v127 = vld [vmem:[%s19 + $0x1a8] sm:$0xff]
      %128 = vst [vmem:[%s20 + $0x1a8] sm:$0xff] %v127
      %v129 = vld [vmem:[%s19 + $0x1b0] sm:$0xff]
      %130 = vst [vmem:[%s20 + $0x1b0] sm:$0xff] %v129
      %v131 = vld [vmem:[%s19 + $0x1b8] sm:$0xff]
      %132 = vst [vmem:[%s20 + $0x1b8] sm:$0xff] %v131
      %v133 = vld [vmem:[%s19 + $0x1c0] sm:$0xff]
      %134 = vst [vmem:[%s20 + $0x1c0] sm:$0xff] %v133
      %v135 = vld [vmem:[%s19 + $0x1c8] sm:$0xff]
      %136 = vst [vmem:[%s20 + $0x1c8] sm:$0xff] %v135
      %v137 = vld [vmem:[%s19 + $0x1d0] sm:$0xff]
      %138 = vst [vmem:[%s20 + $0x1d0] sm:$0xff] %v137
      %v139 = vld [vmem:[%s19 + $0x1d8] sm:$0xff]
      %140 = vst [vmem:[%s20 + $0x1d8] sm:$0xff] %v139
      %v141 = vld [vmem:[%s19 + $0x1e0] sm:$0xff]
      %142 = vst [vmem:[%s20 + $0x1e0] sm:$0xff] %v141
      %v143 = vld [vmem:[%s19 + $0x1e8] sm:$0xff]
      %144 = vst [vmem:[%s20 + $0x1e8] sm:$0xff] %v143
      %v145 = vld [vmem:[%s19 + $0x1f0] sm:$0xff]
      %146 = vst [vmem:[%s20 + $0x1f0] sm:$0xff] %v145
      %v147 = vld [vmem:[%s19 + $0x1f8] sm:$0xff]
      %148 = vst [vmem:[%s20 + $0x1f8] sm:$0xff] %v147
    $region10: #{tpu_custom_call.1} parent=4 // loop_footer
      %s18 = sadd.s32 1, %s14
    $region11: #{tpu_custom_call.1} parent=4 // loop_footer_branch
      %13 = sbr.rel target = $region7
    $region12: #{tpu_custom_call.1} parent=4 // loop_exit
      _
  $region5: #{tpu_custom_call.1} parent=0 // pred_fallthru
    _
  // Predicated region
  $region13: #{tpu_custom_call.1} parent=0 // pred_check
    _
  $region14: #{tpu_custom_call.1} parent=0 // pred_check_branch
    %150 = sbr.rel target = $region16
  $region15: #{tpu_custom_call.1} parent=0 // pred_region
    _
  $region16: #{tpu_custom_call.1} parent=0 // pred_fallthru
    _
  // Predicated region
  $region17: #{tpu_custom_call.1} parent=0 // pred_check
    _
  $region18: #{tpu_custom_call.1} parent=0 // pred_check_branch
    %153 = sbr.rel (0) target = $region20
  $region19: #{tpu_custom_call.1} parent=0 // pred_region
    %154 = vsyncadd [#allocation2], 8192
  $region20: #{tpu_custom_call.1} parent=0 // pred_fallthru
    _
  %s155 = smul.u32 512, 1
  %s156 = sshll.u32 %s155, 4
  %157 = dma.done [#allocation2], %s156
  %158 = vsyncmov [#allocation2]
  %s159 = vpop.sfrf %158
  %p160 = scmp.eq.s32.totalorder %s159, 0
  %p161 = pneg %p160
  %163 = shalt.err (%p161)

</llo_original>
